<compile_context>
chip_gen: v7x
topology: tpu7x:2x2x1
jax: 0.10.0
libtpu: 0.0.40
codegen_flags: <defaults>
</compile_context>

<pallas_src>
import numpy as np
import jax
import jax.numpy as jnp
from jax.experimental import pallas as pl
from jax.experimental.pallas import tpu as pltpu

# ---- small problem sizes consistent with the module ----
N, C_IN, C_OUT, L = 2, 4, 32, 16
C4 = C_OUT // 4              # 8
C3P = 32                     # branches 2..4 (24 real lanes) zero-padded to 32 lanes
NL = N * L                   # 32
K1, PAD1 = 15, 7             # branch-1 conv (size=15, padding=7)
K_BR = (17, 19, 21)          # branch 2/3/4 second convs (size+2, size+4, size+6)
PAD_BR = (8, 9, 10)
KB, PADB = 21, 10            # unified tap count / padding for branches 2..4
LPX = L + 2 * PAD1           # 30: padded length fed to the kernel
R_A = 1 + K1 * C_IN          # 61: [ones | im2col_15] columns
CENTER = PAD1                # im2col-15 tap whose rows equal x[l] (carries 1x1 convs)
EPS = 1e-5


def inc_block_kernel(xp_ref, w1_ref, w2_ref, out_ref):
    xp = xp_ref[...]                                             # (N*LPX, C_IN)

    # ---- branch-1 im2col (+ ones column) with static slices, all in registers ----
    p15 = jnp.concatenate(
        [jnp.concatenate([xp[n * LPX + k: n * LPX + k + L, :] for k in range(K1)],
                         axis=1) for n in range(N)], axis=0)     # (NL, 60)
    a = jnp.concatenate([jnp.ones((NL, 1), jnp.float32), p15], axis=1)   # (NL, 61)

    # ---- matmul #1: residual + branch-1 conv*BN + all folded shifts (cols 0:32),
    #      branch 2..4 pointwise conv + BN_a (cols 32:64, last 8 lanes zero-padded)
    g = jnp.dot(a, w1_ref[...], preferred_element_type=jnp.float32)      # (NL, 64)
    base = g[:, :C_OUT]                                          # (NL, 32)
    h = g[:, C_OUT:]                                             # (NL, 32)
    h = jnp.where(h > 0, h, 0.2 * h)                             # LeakyReLU(0.2)

    # ---- per-sample zero-pad along L + 21-tap im2col, 32-lane-aligned taps ----
    zpad = jnp.zeros((PADB, C3P), jnp.float32)

    def taps(hs):                                                # hs: (L, 32)
        hp = jnp.concatenate([zpad, hs, zpad], axis=0)           # (L + 20, 32)
        return jnp.concatenate([hp[t:t + L, :] for t in range(KB)], axis=1)

    patches = jnp.concatenate(
        [taps(h[n * L:(n + 1) * L, :]) for n in range(N)], axis=0)       # (NL, 672)

    # ---- matmul #2: block-diagonal centered convs for branches 2..4 (cols 8:32) ----
    cb = jnp.dot(patches, w2_ref[...], preferred_element_type=jnp.float32)  # (NL, 32)

    out = jnp.maximum(base + cb, 0.0)                            # (NL, 32)
    # lane-dense single-vreg store: lane block q of row r holds out row 8*q + r
    out_ref[...] = jnp.concatenate(
        [out[q * 8:(q + 1) * 8, :] for q in range(4)], axis=1)   # (8, 128)


# ------------- one-time host-side weight folding (numpy, out of the call path) -------------
def prepare_inc_block(p):
    pn = jax.tree_util.tree_map(lambda t: np.asarray(t, np.float32), p)

    def fold(gamma, beta, mean, var, bias=None):
        s = gamma / np.sqrt(var + EPS)
        t = beta - mean * s
        if bias is not None:
            t = t + bias * s
        return s, t

    W1 = np.zeros((R_A, C_OUT + C3P), np.float32)                # (61, 64)
    W2 = np.zeros((KB * C3P, C_OUT), np.float32)                 # (672, 32)

    # branch 1: k=15 conv, BN scale into weights, BN(+bias) shift into the ones row
    s1, t1 = fold(*pn['bn1'], bias=pn['bc1'])
    W1[1:, 0:C4] = (pn['wc1'] * s1[None, None, :]).reshape(K1 * C_IN, C4)
    W1[0, 0:C4] = t1

    # residual 1x1 (no bias) rides on the centre im2col tap (== x[l])
    r0 = 1 + CENTER * C_IN
    W1[r0:r0 + C_IN, 0:C_OUT] += pn['w1x1']

    for i in range(3):
        sa, ta = fold(*pn['bn_a'][i])
        sb, tb = fold(*pn['bn_b'][i], bias=pn['bconv'][i])
        # pointwise conv + BN_a -> h lanes [8i, 8i+8)  (W1 columns 32..56; 56..64 stay zero)
        W1[r0:r0 + C_IN, C_OUT + i * C4:C_OUT + (i + 1) * C4] += pn['wpw'][i] * sa[None, :]
        W1[0, C_OUT + i * C4:C_OUT + (i + 1) * C4] = ta
        # BN_b shift (incl. conv bias) folded into the ones row at the output columns
        W1[0, (i + 1) * C4:(i + 2) * C4] = tb
        # second conv weights * BN_b scale, centred in the 21-tap block-diagonal W2
        off = (KB - K_BR[i]) // 2                                # 2, 1, 0
        wk = pn['wconv'][i] * sb[None, None, :]                  # (K_i, C4, C4)
        for k in range(K_BR[i]):
            r = (off + k) * C3P + i * C4
            W2[r:r + C4, (i + 1) * C4:(i + 2) * C4] = wk[k]

    return jnp.asarray(W1), jnp.asarray(W2)


def inc_block_forward(x_ncl, W1, W2):
    x = jnp.transpose(x_ncl, (0, 2, 1)).astype(jnp.float32)      # (N, L, C_IN)
    xp = jnp.pad(x, ((0, 0), (PAD1, PAD1), (0, 0))).reshape(N * LPX, C_IN)

    out128 = pl.pallas_call(
        inc_block_kernel,
        out_shape=jax.ShapeDtypeStruct((8, 4 * C_OUT), jnp.float32),
        grid=(1,),                           # whole (tiny) batch in one step
        in_specs=[
            pl.BlockSpec((N * LPX, C_IN), lambda i: (0, 0)),
            pl.BlockSpec((R_A, C_OUT + C3P), lambda i: (0, 0)),
            pl.BlockSpec((KB * C3P, C_OUT), lambda i: (0, 0)),
        ],
        out_specs=pl.BlockSpec((8, 4 * C_OUT), lambda i: (0, 0)),
        compiler_params=pltpu.CompilerParams(dimension_semantics=("arbitrary",)),
    )(xp, W1, W2)

    # undo the lane-dense packing: out128[r, 32q:32q+32] == out[8q + r]
    out = out128.reshape(8, 4, C_OUT).transpose(1, 0, 2).reshape(NL, C_OUT)
    return jnp.transpose(out.reshape(N, L, C_OUT), (0, 2, 1))    # (N, C_OUT, L)


# ------------------ pure-JAX reference (for correctness) ------------------
def ref_forward(x_ncl, p):
    x = jnp.transpose(x_ncl, (0, 2, 1)).astype(jnp.float32)

    def bn(y, gamma, beta, mean, var):
        return (y - mean) / jnp.sqrt(var + EPS) * gamma + beta

    def conv1d(h, w, pad):   # h: (N, L, Cin), w: (K, Cin, Cout)
        return jax.lax.conv_general_dilated(
            h, w, window_strides=(1,), padding=[(pad, pad)],
            dimension_numbers=('NWC', 'WIO', 'NWC'))

    res = jnp.einsum('nlc,co->nlo', x, p['w1x1'])
    c1 = bn(conv1d(x, p['wc1'], PAD1) + p['bc1'], *p['bn1'])
    cs = [c1]
    for i in range(3):
        h = bn(jnp.einsum('nlc,co->nlo', x, p['wpw'][i]), *p['bn_a'][i])
        h = jnp.where(h > 0, h, 0.2 * h)
        cb = bn(conv1d(h, p['wconv'][i], PAD_BR[i]) + p['bconv'][i], *p['bn_b'][i])
        cs.append(cb)
    out = jnp.maximum(jnp.concatenate(cs, axis=-1) + res, 0.0)
    return jnp.transpose(out, (0, 2, 1))


# ------------------ deterministic parameter construction ------------------
def make_params(key):
    keys = iter(jax.random.split(key, 64))

    def nrm(shape, scale=0.1):
        return scale * jax.random.normal(next(keys), shape, jnp.float32)

    def bn_params():
        return (1.0 + nrm((C4,)), nrm((C4,)), nrm((C4,)),
                1.0 + 0.5 * jax.random.uniform(next(keys), (C4,), jnp.float32))

    return {
        'w1x1': nrm((C_IN, C_OUT)),                 # Conv1d(in, out, k=1, bias=False)
        'wc1': nrm((K1, C_IN, C4)),                 # Conv1d(in, out//4, k=15)
        'bc1': nrm((C4,)),
        'bn1': bn_params(),
        'wpw': [nrm((C_IN, C4)) for _ in range(3)],                 # 1x1, bias=False
        'bn_a': [bn_params() for _ in range(3)],
        'wconv': [nrm((K_BR[i], C4, C4)) for i in range(3)],        # k = 17/19/21
        'bconv': [nrm((C4,)) for _ in range(3)],
        'bn_b': [bn_params() for _ in range(3)],
    }


if __name__ == "__main__":
    key = jax.random.PRNGKey(0)
    kp, kx = jax.random.split(key)
    params = make_params(kp)
    x = jax.random.normal(kx, (N, C_IN, L), jnp.float32)        # PyTorch NCL layout

    # one-time host-side folding, hoisted out of the per-call path
    W1, W2 = prepare_inc_block(params)
    fwd = jax.jit(inc_block_forward)

    out = jax.block_until_ready(fwd(x, W1, W2))
    ref = jax.block_until_ready(ref_forward(x, params))
    np.testing.assert_allclose(np.asarray(out), np.asarray(ref), rtol=2e-3, atol=2e-3)
    print("KERNEL_OK")
</pallas_src>

<mosaic_0001>
module attributes {stable_mosaic.version = 11 : i64} {
  func.func @inc_block_kernel(%arg0: i32, %arg1: memref<60x4xf32, #tpu.memory_space<vmem>>, %arg2: memref<61x64xf32, #tpu.memory_space<vmem>>, %arg3: memref<672x32xf32, #tpu.memory_space<vmem>>, %arg4: memref<8x128xf32, #tpu.memory_space<vmem>>) attributes {dimension_semantics = [#tpu.dimension_semantics<arbitrary>], iteration_bounds = array<i64: 1>, scalar_prefetch = 0 : i64, scratch_operands = 0 : i64, tpu.core_type = #tpu.core_type<tc>, window_params = [{pipeline_mode = #tpu.pipeline_mode<synchronous>, transform_indices = @transform_0, window_bounds = array<i64: 60, 4>}, {pipeline_mode = #tpu.pipeline_mode<synchronous>, transform_indices = @transform_1, window_bounds = array<i64: 61, 64>}, {pipeline_mode = #tpu.pipeline_mode<synchronous>, transform_indices = @transform_2, window_bounds = array<i64: 672, 32>}, {pipeline_mode = #tpu.pipeline_mode<synchronous>, transform_indices = @transform_3, window_bounds = array<i64: 8, 128>}]} {
    %c0 = arith.constant 0 : index
    %c0_0 = arith.constant 0 : index
    %0 = vector.load %arg1[%c0, %c0_0] : memref<60x4xf32, #tpu.memory_space<vmem>>, vector<60x4xf32>
    %1 = vector.extract_strided_slice %0 {offsets = [0, 0], sizes = [16, 4], strides = [1, 1]} : vector<60x4xf32> to vector<16x4xf32>
    %2 = vector.extract_strided_slice %0 {offsets = [1, 0], sizes = [16, 4], strides = [1, 1]} : vector<60x4xf32> to vector<16x4xf32>
    %3 = vector.extract_strided_slice %0 {offsets = [2, 0], sizes = [16, 4], strides = [1, 1]} : vector<60x4xf32> to vector<16x4xf32>
    %4 = vector.extract_strided_slice %0 {offsets = [3, 0], sizes = [16, 4], strides = [1, 1]} : vector<60x4xf32> to vector<16x4xf32>
    %5 = vector.extract_strided_slice %0 {offsets = [4, 0], sizes = [16, 4], strides = [1, 1]} : vector<60x4xf32> to vector<16x4xf32>
    %6 = vector.extract_strided_slice %0 {offsets = [5, 0], sizes = [16, 4], strides = [1, 1]} : vector<60x4xf32> to vector<16x4xf32>
    %7 = vector.extract_strided_slice %0 {offsets = [6, 0], sizes = [16, 4], strides = [1, 1]} : vector<60x4xf32> to vector<16x4xf32>
    %8 = vector.extract_strided_slice %0 {offsets = [7, 0], sizes = [16, 4], strides = [1, 1]} : vector<60x4xf32> to vector<16x4xf32>
    %9 = vector.extract_strided_slice %0 {offsets = [8, 0], sizes = [16, 4], strides = [1, 1]} : vector<60x4xf32> to vector<16x4xf32>
    %10 = vector.extract_strided_slice %0 {offsets = [9, 0], sizes = [16, 4], strides = [1, 1]} : vector<60x4xf32> to vector<16x4xf32>
    %11 = vector.extract_strided_slice %0 {offsets = [10, 0], sizes = [16, 4], strides = [1, 1]} : vector<60x4xf32> to vector<16x4xf32>
    %12 = vector.extract_strided_slice %0 {offsets = [11, 0], sizes = [16, 4], strides = [1, 1]} : vector<60x4xf32> to vector<16x4xf32>
    %13 = vector.extract_strided_slice %0 {offsets = [12, 0], sizes = [16, 4], strides = [1, 1]} : vector<60x4xf32> to vector<16x4xf32>
    %14 = vector.extract_strided_slice %0 {offsets = [13, 0], sizes = [16, 4], strides = [1, 1]} : vector<60x4xf32> to vector<16x4xf32>
    %15 = vector.extract_strided_slice %0 {offsets = [14, 0], sizes = [16, 4], strides = [1, 1]} : vector<60x4xf32> to vector<16x4xf32>
    %16 = tpu.concatenate %1, %2, %3, %4, %5, %6, %7, %8, %9, %10, %11, %12, %13, %14, %15 in 1 : vector<16x4xf32>, vector<16x4xf32>, vector<16x4xf32>, vector<16x4xf32>, vector<16x4xf32>, vector<16x4xf32>, vector<16x4xf32>, vector<16x4xf32>, vector<16x4xf32>, vector<16x4xf32>, vector<16x4xf32>, vector<16x4xf32>, vector<16x4xf32>, vector<16x4xf32>, vector<16x4xf32> -> vector<16x60xf32>
    %17 = vector.extract_strided_slice %0 {offsets = [30, 0], sizes = [16, 4], strides = [1, 1]} : vector<60x4xf32> to vector<16x4xf32>
    %18 = vector.extract_strided_slice %0 {offsets = [31, 0], sizes = [16, 4], strides = [1, 1]} : vector<60x4xf32> to vector<16x4xf32>
    %19 = vector.extract_strided_slice %0 {offsets = [32, 0], sizes = [16, 4], strides = [1, 1]} : vector<60x4xf32> to vector<16x4xf32>
    %20 = vector.extract_strided_slice %0 {offsets = [33, 0], sizes = [16, 4], strides = [1, 1]} : vector<60x4xf32> to vector<16x4xf32>
    %21 = vector.extract_strided_slice %0 {offsets = [34, 0], sizes = [16, 4], strides = [1, 1]} : vector<60x4xf32> to vector<16x4xf32>
    %22 = vector.extract_strided_slice %0 {offsets = [35, 0], sizes = [16, 4], strides = [1, 1]} : vector<60x4xf32> to vector<16x4xf32>
    %23 = vector.extract_strided_slice %0 {offsets = [36, 0], sizes = [16, 4], strides = [1, 1]} : vector<60x4xf32> to vector<16x4xf32>
    %24 = vector.extract_strided_slice %0 {offsets = [37, 0], sizes = [16, 4], strides = [1, 1]} : vector<60x4xf32> to vector<16x4xf32>
    %25 = vector.extract_strided_slice %0 {offsets = [38, 0], sizes = [16, 4], strides = [1, 1]} : vector<60x4xf32> to vector<16x4xf32>
    %26 = vector.extract_strided_slice %0 {offsets = [39, 0], sizes = [16, 4], strides = [1, 1]} : vector<60x4xf32> to vector<16x4xf32>
    %27 = vector.extract_strided_slice %0 {offsets = [40, 0], sizes = [16, 4], strides = [1, 1]} : vector<60x4xf32> to vector<16x4xf32>
    %28 = vector.extract_strided_slice %0 {offsets = [41, 0], sizes = [16, 4], strides = [1, 1]} : vector<60x4xf32> to vector<16x4xf32>
    %29 = vector.extract_strided_slice %0 {offsets = [42, 0], sizes = [16, 4], strides = [1, 1]} : vector<60x4xf32> to vector<16x4xf32>
    %30 = vector.extract_strided_slice %0 {offsets = [43, 0], sizes = [16, 4], strides = [1, 1]} : vector<60x4xf32> to vector<16x4xf32>
    %31 = vector.extract_strided_slice %0 {offsets = [44, 0], sizes = [16, 4], strides = [1, 1]} : vector<60x4xf32> to vector<16x4xf32>
    %32 = tpu.concatenate %17, %18, %19, %20, %21, %22, %23, %24, %25, %26, %27, %28, %29, %30, %31 in 1 : vector<16x4xf32>, vector<16x4xf32>, vector<16x4xf32>, vector<16x4xf32>, vector<16x4xf32>, vector<16x4xf32>, vector<16x4xf32>, vector<16x4xf32>, vector<16x4xf32>, vector<16x4xf32>, vector<16x4xf32>, vector<16x4xf32>, vector<16x4xf32>, vector<16x4xf32>, vector<16x4xf32> -> vector<16x60xf32>
    %33 = tpu.concatenate %16, %32 in 0 : vector<16x60xf32>, vector<16x60xf32> -> vector<32x60xf32>
    %cst = arith.constant 1.000000e+00 : f32
    %34 = vector.broadcast %cst : f32 to vector<32x1xf32>
    %35 = tpu.concatenate %34, %33 in 1 : vector<32x1xf32>, vector<32x60xf32> -> vector<32x61xf32>
    %c0_1 = arith.constant 0 : index
    %c0_2 = arith.constant 0 : index
    %36 = vector.load %arg2[%c0_1, %c0_2] : memref<61x64xf32, #tpu.memory_space<vmem>>, vector<61x64xf32>
    %cst_3 = arith.constant dense<0.000000e+00> : vector<32x64xf32>
    %37 = tpu.matmul %35, %36, %cst_3 {dimension_numbers = #tpu.dot_dimension_numbers<[1], [0], [0], [1], [0, 0, 1, 1], [], []>} : vector<32x61xf32>, vector<61x64xf32>, vector<32x64xf32> -> vector<32x64xf32>
    %38 = vector.extract_strided_slice %37 {offsets = [0, 0], sizes = [32, 32], strides = [1, 1]} : vector<32x64xf32> to vector<32x32xf32>
    %39 = vector.extract_strided_slice %37 {offsets = [0, 32], sizes = [32, 32], strides = [1, 1]} : vector<32x64xf32> to vector<32x32xf32>
    %cst_4 = arith.constant 0.000000e+00 : f32
    %40 = vector.broadcast %cst_4 : f32 to vector<32x32xf32>
    %41 = arith.cmpf ogt, %39, %40 : vector<32x32xf32>
    %cst_5 = arith.constant 2.000000e-01 : f32
    %42 = vector.broadcast %cst_5 : f32 to vector<32x32xf32>
    %43 = arith.mulf %42, %39 : vector<32x32xf32>
    %44 = arith.select %41, %39, %43 : vector<32x32xi1>, vector<32x32xf32>
    %cst_6 = arith.constant 0.000000e+00 : f32
    %45 = vector.broadcast %cst_6 : f32 to vector<10x32xf32>
    %46 = vector.extract_strided_slice %44 {offsets = [0, 0], sizes = [16, 32], strides = [1, 1]} : vector<32x32xf32> to vector<16x32xf32>
    %47 = tpu.concatenate %45, %46, %45 in 0 : vector<10x32xf32>, vector<16x32xf32>, vector<10x32xf32> -> vector<36x32xf32>
    %48 = vector.extract_strided_slice %47 {offsets = [0, 0], sizes = [16, 32], strides = [1, 1]} : vector<36x32xf32> to vector<16x32xf32>
    %49 = vector.extract_strided_slice %47 {offsets = [1, 0], sizes = [16, 32], strides = [1, 1]} : vector<36x32xf32> to vector<16x32xf32>
    %50 = vector.extract_strided_slice %47 {offsets = [2, 0], sizes = [16, 32], strides = [1, 1]} : vector<36x32xf32> to vector<16x32xf32>
    %51 = vector.extract_strided_slice %47 {offsets = [3, 0], sizes = [16, 32], strides = [1, 1]} : vector<36x32xf32> to vector<16x32xf32>
    %52 = vector.extract_strided_slice %47 {offsets = [4, 0], sizes = [16, 32], strides = [1, 1]} : vector<36x32xf32> to vector<16x32xf32>
    %53 = vector.extract_strided_slice %47 {offsets = [5, 0], sizes = [16, 32], strides = [1, 1]} : vector<36x32xf32> to vector<16x32xf32>
    %54 = vector.extract_strided_slice %47 {offsets = [6, 0], sizes = [16, 32], strides = [1, 1]} : vector<36x32xf32> to vector<16x32xf32>
    %55 = vector.extract_strided_slice %47 {offsets = [7, 0], sizes = [16, 32], strides = [1, 1]} : vector<36x32xf32> to vector<16x32xf32>
    %56 = vector.extract_strided_slice %47 {offsets = [8, 0], sizes = [16, 32], strides = [1, 1]} : vector<36x32xf32> to vector<16x32xf32>
    %57 = vector.extract_strided_slice %47 {offsets = [9, 0], sizes = [16, 32], strides = [1, 1]} : vector<36x32xf32> to vector<16x32xf32>
    %58 = vector.extract_strided_slice %47 {offsets = [10, 0], sizes = [16, 32], strides = [1, 1]} : vector<36x32xf32> to vector<16x32xf32>
    %59 = vector.extract_strided_slice %47 {offsets = [11, 0], sizes = [16, 32], strides = [1, 1]} : vector<36x32xf32> to vector<16x32xf32>
    %60 = vector.extract_strided_slice %47 {offsets = [12, 0], sizes = [16, 32], strides = [1, 1]} : vector<36x32xf32> to vector<16x32xf32>
    %61 = vector.extract_strided_slice %47 {offsets = [13, 0], sizes = [16, 32], strides = [1, 1]} : vector<36x32xf32> to vector<16x32xf32>
    %62 = vector.extract_strided_slice %47 {offsets = [14, 0], sizes = [16, 32], strides = [1, 1]} : vector<36x32xf32> to vector<16x32xf32>
    %63 = vector.extract_strided_slice %47 {offsets = [15, 0], sizes = [16, 32], strides = [1, 1]} : vector<36x32xf32> to vector<16x32xf32>
    %64 = vector.extract_strided_slice %47 {offsets = [16, 0], sizes = [16, 32], strides = [1, 1]} : vector<36x32xf32> to vector<16x32xf32>
    %65 = vector.extract_strided_slice %47 {offsets = [17, 0], sizes = [16, 32], strides = [1, 1]} : vector<36x32xf32> to vector<16x32xf32>
    %66 = vector.extract_strided_slice %47 {offsets = [18, 0], sizes = [16, 32], strides = [1, 1]} : vector<36x32xf32> to vector<16x32xf32>
    %67 = vector.extract_strided_slice %47 {offsets = [19, 0], sizes = [16, 32], strides = [1, 1]} : vector<36x32xf32> to vector<16x32xf32>
    %68 = vector.extract_strided_slice %47 {offsets = [20, 0], sizes = [16, 32], strides = [1, 1]} : vector<36x32xf32> to vector<16x32xf32>
    %69 = tpu.concatenate %48, %49, %50, %51, %52, %53, %54, %55, %56, %57, %58, %59, %60, %61, %62, %63 in 1 : vector<16x32xf32>, vector<16x32xf32>, vector<16x32xf32>, vector<16x32xf32>, vector<16x32xf32>, vector<16x32xf32>, vector<16x32xf32>, vector<16x32xf32>, vector<16x32xf32>, vector<16x32xf32>, vector<16x32xf32>, vector<16x32xf32>, vector<16x32xf32>, vector<16x32xf32>, vector<16x32xf32>, vector<16x32xf32> -> vector<16x512xf32>
    %70 = tpu.concatenate %64, %65, %66, %67, %68 in 1 : vector<16x32xf32>, vector<16x32xf32>, vector<16x32xf32>, vector<16x32xf32>, vector<16x32xf32> -> vector<16x160xf32>
    %71 = tpu.concatenate %69, %70 in 1 : vector<16x512xf32>, vector<16x160xf32> -> vector<16x672xf32>
    %72 = vector.extract_strided_slice %44 {offsets = [16, 0], sizes = [16, 32], strides = [1, 1]} : vector<32x32xf32> to vector<16x32xf32>
    %73 = tpu.concatenate %45, %72, %45 in 0 : vector<10x32xf32>, vector<16x32xf32>, vector<10x32xf32> -> vector<36x32xf32>
    %74 = vector.extract_strided_slice %73 {offsets = [0, 0], sizes = [16, 32], strides = [1, 1]} : vector<36x32xf32> to vector<16x32xf32>
    %75 = vector.extract_strided_slice %73 {offsets = [1, 0], sizes = [16, 32], strides = [1, 1]} : vector<36x32xf32> to vector<16x32xf32>
    %76 = vector.extract_strided_slice %73 {offsets = [2, 0], sizes = [16, 32], strides = [1, 1]} : vector<36x32xf32> to vector<16x32xf32>
    %77 = vector.extract_strided_slice %73 {offsets = [3, 0], sizes = [16, 32], strides = [1, 1]} : vector<36x32xf32> to vector<16x32xf32>
    %78 = vector.extract_strided_slice %73 {offsets = [4, 0], sizes = [16, 32], strides = [1, 1]} : vector<36x32xf32> to vector<16x32xf32>
    %79 = vector.extract_strided_slice %73 {offsets = [5, 0], sizes = [16, 32], strides = [1, 1]} : vector<36x32xf32> to vector<16x32xf32>
    %80 = vector.extract_strided_slice %73 {offsets = [6, 0], sizes = [16, 32], strides = [1, 1]} : vector<36x32xf32> to vector<16x32xf32>
    %81 = vector.extract_strided_slice %73 {offsets = [7, 0], sizes = [16, 32], strides = [1, 1]} : vector<36x32xf32> to vector<16x32xf32>
    %82 = vector.extract_strided_slice %73 {offsets = [8, 0], sizes = [16, 32], strides = [1, 1]} : vector<36x32xf32> to vector<16x32xf32>
    %83 = vector.extract_strided_slice %73 {offsets = [9, 0], sizes = [16, 32], strides = [1, 1]} : vector<36x32xf32> to vector<16x32xf32>
    %84 = vector.extract_strided_slice %73 {offsets = [10, 0], sizes = [16, 32], strides = [1, 1]} : vector<36x32xf32> to vector<16x32xf32>
    %85 = vector.extract_strided_slice %73 {offsets = [11, 0], sizes = [16, 32], strides = [1, 1]} : vector<36x32xf32> to vector<16x32xf32>
    %86 = vector.extract_strided_slice %73 {offsets = [12, 0], sizes = [16, 32], strides = [1, 1]} : vector<36x32xf32> to vector<16x32xf32>
    %87 = vector.extract_strided_slice %73 {offsets = [13, 0], sizes = [16, 32], strides = [1, 1]} : vector<36x32xf32> to vector<16x32xf32>
    %88 = vector.extract_strided_slice %73 {offsets = [14, 0], sizes = [16, 32], strides = [1, 1]} : vector<36x32xf32> to vector<16x32xf32>
    %89 = vector.extract_strided_slice %73 {offsets = [15, 0], sizes = [16, 32], strides = [1, 1]} : vector<36x32xf32> to vector<16x32xf32>
    %90 = vector.extract_strided_slice %73 {offsets = [16, 0], sizes = [16, 32], strides = [1, 1]} : vector<36x32xf32> to vector<16x32xf32>
    %91 = vector.extract_strided_slice %73 {offsets = [17, 0], sizes = [16, 32], strides = [1, 1]} : vector<36x32xf32> to vector<16x32xf32>
    %92 = vector.extract_strided_slice %73 {offsets = [18, 0], sizes = [16, 32], strides = [1, 1]} : vector<36x32xf32> to vector<16x32xf32>
    %93 = vector.extract_strided_slice %73 {offsets = [19, 0], sizes = [16, 32], strides = [1, 1]} : vector<36x32xf32> to vector<16x32xf32>
    %94 = vector.extract_strided_slice %73 {offsets = [20, 0], sizes = [16, 32], strides = [1, 1]} : vector<36x32xf32> to vector<16x32xf32>
    %95 = tpu.concatenate %74, %75, %76, %77, %78, %79, %80, %81, %82, %83, %84, %85, %86, %87, %88, %89 in 1 : vector<16x32xf32>, vector<16x32xf32>, vector<16x32xf32>, vector<16x32xf32>, vector<16x32xf32>, vector<16x32xf32>, vector<16x32xf32>, vector<16x32xf32>, vector<16x32xf32>, vector<16x32xf32>, vector<16x32xf32>, vector<16x32xf32>, vector<16x32xf32>, vector<16x32xf32>, vector<16x32xf32>, vector<16x32xf32> -> vector<16x512xf32>
    %96 = tpu.concatenate %90, %91, %92, %93, %94 in 1 : vector<16x32xf32>, vector<16x32xf32>, vector<16x32xf32>, vector<16x32xf32>, vector<16x32xf32> -> vector<16x160xf32>
    %97 = tpu.concatenate %95, %96 in 1 : vector<16x512xf32>, vector<16x160xf32> -> vector<16x672xf32>
    %98 = tpu.concatenate %71, %97 in 0 : vector<16x672xf32>, vector<16x672xf32> -> vector<32x672xf32>
    %c0_7 = arith.constant 0 : index
    %c0_8 = arith.constant 0 : index
    %99 = vector.load %arg3[%c0_7, %c0_8] : memref<672x32xf32, #tpu.memory_space<vmem>>, vector<672x32xf32>
    %cst_9 = arith.constant dense<0.000000e+00> : vector<32x32xf32>
    %100 = tpu.matmul %98, %99, %cst_9 {dimension_numbers = #tpu.dot_dimension_numbers<[1], [0], [0], [1], [0, 0, 1, 1], [], []>} : vector<32x672xf32>, vector<672x32xf32>, vector<32x32xf32> -> vector<32x32xf32>
    %101 = arith.addf %38, %100 : vector<32x32xf32>
    %cst_10 = arith.constant 0.000000e+00 : f32
    %102 = vector.broadcast %cst_10 : f32 to vector<32x32xf32>
    %103 = arith.maximumf %101, %102 : vector<32x32xf32>
    %104 = vector.extract_strided_slice %103 {offsets = [0, 0], sizes = [8, 32], strides = [1, 1]} : vector<32x32xf32> to vector<8x32xf32>
    %105 = vector.extract_strided_slice %103 {offsets = [8, 0], sizes = [8, 32], strides = [1, 1]} : vector<32x32xf32> to vector<8x32xf32>
    %106 = vector.extract_strided_slice %103 {offsets = [16, 0], sizes = [8, 32], strides = [1, 1]} : vector<32x32xf32> to vector<8x32xf32>
    %107 = vector.extract_strided_slice %103 {offsets = [24, 0], sizes = [8, 32], strides = [1, 1]} : vector<32x32xf32> to vector<8x32xf32>
    %108 = tpu.concatenate %104, %105, %106, %107 in 1 : vector<8x32xf32>, vector<8x32xf32>, vector<8x32xf32>, vector<8x32xf32> -> vector<8x128xf32>
    %c0_11 = arith.constant 0 : index
    %c0_12 = arith.constant 0 : index
    %109 = vector.load %arg4[%c0_11, %c0_12] : memref<8x128xf32, #tpu.memory_space<vmem>>, vector<8x128xf32>
    tpu.vector_store %arg4[%c0_11, %c0_12], %108 {strides = array<i32>} : memref<8x128xf32, #tpu.memory_space<vmem>>, vector<8x128xf32>,
    return
  }
  func.func @transform_0(%arg0: i32) -> (i32, i32) {
    %c0_i32 = arith.constant 0 : i32
    %c0_i32_0 = arith.constant 0 : i32
    %c0_i32_1 = arith.constant 0 : i32
    return %c0_i32, %c0_i32_0 : i32, i32
  }
  func.func @transform_1(%arg0: i32) -> (i32, i32) {
    %c0_i32 = arith.constant 0 : i32
    %c0_i32_0 = arith.constant 0 : i32
    %c0_i32_1 = arith.constant 0 : i32
    return %c0_i32, %c0_i32_0 : i32, i32
  }
  func.func @transform_2(%arg0: i32) -> (i32, i32) {
    %c0_i32 = arith.constant 0 : i32
    %c0_i32_0 = arith.constant 0 : i32
    %c0_i32_1 = arith.constant 0 : i32
    return %c0_i32, %c0_i32_0 : i32, i32
  }
  func.func @transform_3(%arg0: i32) -> (i32, i32) {
    %c0_i32 = arith.constant 0 : i32
    %c0_i32_0 = arith.constant 0 : i32
    %c0_i32_1 = arith.constant 0 : i32
    return %c0_i32, %c0_i32_0 : i32, i32
  }
}

</mosaic_0001>

<llo_original>
// kernel: inc_block_forward.1
$region0: #{inc_block_forward.1}
  #allocation0 [shape = 'u32[]', space=smem, size = 0x4, offset = 0x4, fixed_abs, tag = 'smem constant byte address 0x4 - core index']
  #allocation1 [shape = 'u32[144,128]{1,0:T(1,128)}', space=vmem, size = 0x12000, scoped, tag = 'internal scratch']
  %s0 = inlined_call_operand.vmem [shape: f32[60,4], index: 0, kind: input, shape index: {}]
  %s1 = inlined_call_operand.vmem [shape: f32[61,64], index: 1, kind: input, shape index: {}]
  %s2 = inlined_call_operand.vmem [shape: f32[672,32], index: 2, kind: input, shape index: {}]
  %s3 = inlined_call_operand.vmem [shape: f32[8,128], index: 3, kind: output, shape index: {}]
  %s4 = sld [smem:[#allocation0]]
  $region22: #{inc_block_forward.1} parent=0
    _
  %s6 = ssub.s32 1, %s4
  %s7 = scalar_select 0, %s6, %s4
  // Predicated region
  $region2: #{inc_block_forward.1} parent=0 // pred_check
    _
  $region3: #{inc_block_forward.1} parent=0 // pred_check_branch
    %9 = sbr.rel (0) target = $region5
  $region4: #{inc_block_forward.1} parent=0 // pred_region
    _
  $region5: #{inc_block_forward.1} parent=0 // pred_fallthru
    _
  // Predicated region
  $region6: #{inc_block_forward.1} parent=0 // pred_check
    _
  $region7: #{inc_block_forward.1} parent=0 // pred_check_branch
    %11 = sbr.rel (0) target = $region9
  $region8: #{inc_block_forward.1} parent=0 // pred_region
    _
  $region9: #{inc_block_forward.1} parent=0 // pred_fallthru
    _
  // Predicated region
  $region10: #{inc_block_forward.1} parent=0 // pred_check
    _
  $region11: #{inc_block_forward.1} parent=0 // pred_check_branch
    %13 = sbr.rel (0) target = $region13
  $region12: #{inc_block_forward.1} parent=0 // pred_region
    _
  $region13: #{inc_block_forward.1} parent=0 // pred_fallthru
    _
  %v14 = vld [vmem:[%s0] sm:$0xff]
  %v15 = vld [vmem:[%s0 + $0x8] sm:$0xff]
  %v16 = vld [vmem:[%s0 + $0x10] sm:$0xff]
  %v17 = vld [vmem:[%s0 + $0x18] sm:$0xff]
  %v18 = vld [vmem:[%s0 + $0x20] sm:$0xff]
  %v19 = vld [vmem:[%s0 + $0x28] sm:$0xff]
  %v20 = vld [vmem:[%s0 + $0x30] sm:$0xff]
  %v21 = vld [vmem:[%s0 + $0x38] sm:$0xf]
  %vm25 = vcmask 1046528
  %v26 = vrot.slane %v14, 1
  %v27 = vrot.slane %v15, 1
  %v28 = vsel %vm25, %v26, %v27
  %v29 = vrot.slane %v16, 1
  %v30 = vsel %vm25, %v27, %v29
  %31 = vrot.lane.b32.xlu0 %v28, 4
  %v32 = vpop.permute.xlu0 %31
  %33 = vrot.lane.b32.xlu0 %v30, 4
  %v34 = vpop.permute.xlu0 %33
  %vm37 = vcmask 1045504
  %v38 = vrot.slane %v14, 2
  %v39 = vrot.slane %v15, 2
  %v40 = vsel %vm37, %v38, %v39
  %v41 = vrot.slane %v16, 2
  %v42 = vsel %vm37, %v39, %v41
  %43 = vrot.lane.b32.xlu0 %v40, 8
  %v44 = vpop.permute.xlu0 %43
  %45 = vrot.lane.b32.xlu0 %v42, 8
  %v46 = vpop.permute.xlu0 %45
  %vm49 = vcmask 1044480
  %v50 = vrot.slane %v14, 3
  %v51 = vrot.slane %v15, 3
  %v52 = vsel %vm49, %v50, %v51
  %v53 = vrot.slane %v16, 3
  %v54 = vsel %vm49, %v51, %v53
  %55 = vrot.lane.b32.xlu0 %v52, 12
  %v56 = vpop.permute.xlu0 %55
  %57 = vrot.lane.b32.xlu0 %v54, 12
  %v58 = vpop.permute.xlu0 %57
  %vm61 = vcmask 1043456
  %v62 = vrot.slane %v14, 4
  %v63 = vrot.slane %v15, 4
  %v64 = vsel %vm61, %v62, %v63
  %v65 = vrot.slane %v16, 4
  %v66 = vsel %vm61, %v63, %v65
  %67 = vrot.lane.b32.xlu0 %v64, 16
  %v68 = vpop.permute.xlu0 %67
  %69 = vrot.lane.b32.xlu0 %v66, 16
  %v70 = vpop.permute.xlu0 %69
  %vm73 = vcmask 1042432
  %v74 = vrot.slane %v14, 5
  %v75 = vrot.slane %v15, 5
  %v76 = vsel %vm73, %v74, %v75
  %v77 = vrot.slane %v16, 5
  %v78 = vsel %vm73, %v75, %v77
  %79 = vrot.lane.b32.xlu0 %v76, 20
  %v80 = vpop.permute.xlu0 %79
  %81 = vrot.lane.b32.xlu0 %v78, 20
  %v82 = vpop.permute.xlu0 %81
  %vm85 = vcmask 1041408
  %v86 = vrot.slane %v14, 6
  %v87 = vrot.slane %v15, 6
  %v88 = vsel %vm85, %v86, %v87
  %v89 = vrot.slane %v16, 6
  %v90 = vsel %vm85, %v87, %v89
  %91 = vrot.lane.b32.xlu0 %v88, 24
  %v92 = vpop.permute.xlu0 %91
  %93 = vrot.lane.b32.xlu0 %v90, 24
  %v94 = vpop.permute.xlu0 %93
  %vm97 = vcmask 1040384
  %v98 = vrot.slane %v14, 7
  %v99 = vrot.slane %v15, 7
  %v100 = vsel %vm97, %v98, %v99
  %v101 = vrot.slane %v16, 7
  %v102 = vsel %vm97, %v99, %v101
  %103 = vrot.lane.b32.xlu0 %v100, 28
  %v104 = vpop.permute.xlu0 %103
  %105 = vrot.lane.b32.xlu0 %v102, 28
  %v106 = vpop.permute.xlu0 %105
  %109 = vrot.lane.b32.xlu0 %v15, 32
  %v110 = vpop.permute.xlu0 %109
  %111 = vrot.lane.b32.xlu0 %v16, 32
  %v112 = vpop.permute.xlu0 %111
  %v116 = vrot.slane %v17, 1
  %v117 = vsel %vm25, %v29, %v116
  %118 = vrot.lane.b32.xlu0 %v30, 36
  %v119 = vpop.permute.xlu0 %118
  %120 = vrot.lane.b32.xlu0 %v117, 36
  %v121 = vpop.permute.xlu0 %120
  %v124 = vrot.slane %v17, 2
  %v125 = vsel %vm37, %v41, %v124
  %126 = vrot.lane.b32.xlu0 %v42, 40
  %v127 = vpop.permute.xlu0 %126
  %128 = vrot.lane.b32.xlu0 %v125, 40
  %v129 = vpop.permute.xlu0 %128
  %v132 = vrot.slane %v17, 3
  %v133 = vsel %vm49, %v53, %v132
  %134 = vrot.lane.b32.xlu0 %v54, 44
  %v135 = vpop.permute.xlu0 %134
  %136 = vrot.lane.b32.xlu0 %v133, 44
  %v137 = vpop.permute.xlu0 %136
  %v140 = vrot.slane %v17, 4
  %v141 = vsel %vm61, %v65, %v140
  %142 = vrot.lane.b32.xlu0 %v66, 48
  %v143 = vpop.permute.xlu0 %142
  %144 = vrot.lane.b32.xlu0 %v141, 48
  %v145 = vpop.permute.xlu0 %144
  %v148 = vrot.slane %v17, 5
  %v149 = vsel %vm73, %v77, %v148
  %150 = vrot.lane.b32.xlu0 %v78, 52
  %v151 = vpop.permute.xlu0 %150
  %152 = vrot.lane.b32.xlu0 %v149, 52
  %v153 = vpop.permute.xlu0 %152
  %v156 = vrot.slane %v17, 6
  %v157 = vsel %vm85, %v89, %v156
  %158 = vrot.lane.b32.xlu0 %v90, 56
  %v159 = vpop.permute.xlu0 %158
  %160 = vrot.lane.b32.xlu0 %v157, 56
  %v161 = vpop.permute.xlu0 %160
  %vm164 = vcmask 31744
  %v165 = vsel %vm164, %v14, %v32
  %v166 = vsel %vm164, %v15, %v34
  %vm167 = vcmask 64512
  %v168 = vsel %vm167, %v165, %v44
  %v169 = vsel %vm167, %v166, %v46
  %vm170 = vcmask 97280
  %v171 = vsel %vm170, %v168, %v56
  %v172 = vsel %vm170, %v169, %v58
  %vm173 = vcmask 130048
  %v174 = vsel %vm173, %v171, %v68
  %v175 = vsel %vm173, %v172, %v70
  %vm176 = vcmask 162816
  %v177 = vsel %vm176, %v174, %v80
  %v178 = vsel %vm176, %v175, %v82
  %vm179 = vcmask 195584
  %v180 = vsel %vm179, %v177, %v92
  %v181 = vsel %vm179, %v178, %v94
  %vm182 = vcmask 228352
  %v183 = vsel %vm182, %v180, %v104
  %v184 = vsel %vm182, %v181, %v106
  %vm185 = vcmask 261120
  %v186 = vsel %vm185, %v183, %v110
  %v187 = vsel %vm185, %v184, %v112
  %vm188 = vcmask 293888
  %v189 = vsel %vm188, %v186, %v119
  %v190 = vsel %vm188, %v187, %v121
  %vm191 = vcmask 326656
  %v192 = vsel %vm191, %v189, %v127
  %v193 = vsel %vm191, %v190, %v129
  %vm194 = vcmask 359424
  %v195 = vsel %vm194, %v192, %v135
  %v196 = vsel %vm194, %v193, %v137
  %vm197 = vcmask 392192
  %v198 = vsel %vm197, %v195, %v143
  %v199 = vsel %vm197, %v196, %v145
  %vm200 = vcmask 424960
  %v201 = vsel %vm200, %v198, %v151
  %v202 = vsel %vm200, %v199, %v153
  %vm203 = vcmask 457728
  %v204 = vsel %vm203, %v201, %v159
  %v205 = vsel %vm203, %v202, %v161
  %v208 = vrot.slane %v18, 1
  %v209 = vsel %vm25, %v116, %v208
  %v210 = vrot.slane %v19, 1
  %v211 = vsel %vm25, %v208, %v210
  %212 = vrot.lane.b32.xlu0 %v209, 4
  %v213 = vpop.permute.xlu0 %212
  %214 = vrot.lane.b32.xlu0 %v211, 4
  %v215 = vpop.permute.xlu0 %214
  %216 = vrot.lane.b32.xlu0 %v210, 4
  %v217 = vpop.permute.xlu0 %216
  %v221 = vrot.slane %v18, 2
  %v222 = vrot.slane %v19, 2
  %v223 = vsel %vm37, %v221, %v222
  %224 = vrot.lane.b32.xlu0 %v221, 8
  %v225 = vpop.permute.xlu0 %224
  %226 = vrot.lane.b32.xlu0 %v223, 8
  %v227 = vpop.permute.xlu0 %226
  %228 = vrot.lane.b32.xlu0 %v222, 8
  %v229 = vpop.permute.xlu0 %228
  %v234 = vrot.slane %v18, 3
  %v235 = vrot.slane %v19, 3
  %v236 = vsel %vm49, %v234, %v235
  %v237 = vrot.slane %v20, 3
  %v238 = vsel %vm49, %v235, %v237
  %239 = vrot.lane.b32.xlu0 %v234, 12
  %v240 = vpop.permute.xlu0 %239
  %241 = vrot.lane.b32.xlu0 %v236, 12
  %v242 = vpop.permute.xlu0 %241
  %243 = vrot.lane.b32.xlu0 %v238, 12
  %v244 = vpop.permute.xlu0 %243
  %v248 = vrot.slane %v18, 4
  %v249 = vrot.slane %v19, 4
  %v250 = vsel %vm61, %v248, %v249
  %v251 = vrot.slane %v20, 4
  %v252 = vsel %vm61, %v249, %v251
  %253 = vrot.lane.b32.xlu0 %v248, 16
  %v254 = vpop.permute.xlu0 %253
  %255 = vrot.lane.b32.xlu0 %v250, 16
  %v256 = vpop.permute.xlu0 %255
  %257 = vrot.lane.b32.xlu0 %v252, 16
  %v258 = vpop.permute.xlu0 %257
  %v262 = vrot.slane %v18, 5
  %v263 = vrot.slane %v19, 5
  %v264 = vsel %vm73, %v262, %v263
  %v265 = vrot.slane %v20, 5
  %v266 = vsel %vm73, %v263, %v265
  %267 = vrot.lane.b32.xlu0 %v262, 20
  %v268 = vpop.permute.xlu0 %267
  %269 = vrot.lane.b32.xlu0 %v264, 20
  %v270 = vpop.permute.xlu0 %269
  %271 = vrot.lane.b32.xlu0 %v266, 20
  %v272 = vpop.permute.xlu0 %271
  %v276 = vrot.slane %v18, 6
  %v277 = vrot.slane %v19, 6
  %v278 = vsel %vm85, %v276, %v277
  %v279 = vrot.slane %v20, 6
  %v280 = vsel %vm85, %v277, %v279
  %281 = vrot.lane.b32.xlu0 %v276, 24
  %v282 = vpop.permute.xlu0 %281
  %283 = vrot.lane.b32.xlu0 %v278, 24
  %v284 = vpop.permute.xlu0 %283
  %285 = vrot.lane.b32.xlu0 %v280, 24
  %v286 = vpop.permute.xlu0 %285
  %v290 = vrot.slane %v18, 7
  %v291 = vrot.slane %v19, 7
  %v292 = vsel %vm97, %v290, %v291
  %v293 = vrot.slane %v20, 7
  %v294 = vsel %vm97, %v291, %v293
  %295 = vrot.lane.b32.xlu0 %v290, 28
  %v296 = vpop.permute.xlu0 %295
  %297 = vrot.lane.b32.xlu0 %v292, 28
  %v298 = vpop.permute.xlu0 %297
  %299 = vrot.lane.b32.xlu0 %v294, 28
  %v300 = vpop.permute.xlu0 %299
  %304 = vrot.lane.b32.xlu0 %v18, 32
  %v305 = vpop.permute.xlu0 %304
  %306 = vrot.lane.b32.xlu0 %v19, 32
  %v307 = vpop.permute.xlu0 %306
  %308 = vrot.lane.b32.xlu0 %v20, 32
  %v309 = vpop.permute.xlu0 %308
  %v313 = vrot.slane %v20, 1
  %v314 = vsel %vm25, %v210, %v313
  %315 = vrot.lane.b32.xlu0 %v211, 36
  %v316 = vpop.permute.xlu0 %315
  %317 = vrot.lane.b32.xlu0 %v314, 36
  %v318 = vpop.permute.xlu0 %317
  %319 = vrot.lane.b32.xlu0 %v313, 36
  %v320 = vpop.permute.xlu0 %319
  %v324 = vrot.slane %v20, 2
  %v325 = vsel %vm37, %v222, %v324
  %326 = vrot.lane.b32.xlu0 %v222, 40
  %v327 = vpop.permute.xlu0 %326
  %328 = vrot.lane.b32.xlu0 %v325, 40
  %v329 = vpop.permute.xlu0 %328
  %330 = vrot.lane.b32.xlu0 %v324, 40
  %v331 = vpop.permute.xlu0 %330
  %v336 = vrot.slane %v21, 3
  %v337 = vsel %vm49, %v237, %v336
  %338 = vrot.lane.b32.xlu0 %v235, 44
  %v339 = vpop.permute.xlu0 %338
  %340 = vrot.lane.b32.xlu0 %v238, 44
  %v341 = vpop.permute.xlu0 %340
  %342 = vrot.lane.b32.xlu0 %v337, 44
  %v343 = vpop.permute.xlu0 %342
  %v347 = vrot.slane %v21, 4
  %v348 = vsel %vm61, %v251, %v347
  %349 = vrot.lane.b32.xlu0 %v249, 48
  %v350 = vpop.permute.xlu0 %349
  %351 = vrot.lane.b32.xlu0 %v252, 48
  %v352 = vpop.permute.xlu0 %351
  %353 = vrot.lane.b32.xlu0 %v348, 48
  %v354 = vpop.permute.xlu0 %353
  %v358 = vrot.slane %v21, 5
  %v359 = vsel %vm73, %v265, %v358
  %360 = vrot.lane.b32.xlu0 %v263, 52
  %v361 = vpop.permute.xlu0 %360
  %362 = vrot.lane.b32.xlu0 %v266, 52
  %v363 = vpop.permute.xlu0 %362
  %364 = vrot.lane.b32.xlu0 %v359, 52
  %v365 = vpop.permute.xlu0 %364
  %v369 = vrot.slane %v21, 6
  %v370 = vsel %vm85, %v279, %v369
  %371 = vrot.lane.b32.xlu0 %v277, 56
  %v372 = vpop.permute.xlu0 %371
  %373 = vrot.lane.b32.xlu0 %v280, 56
  %v374 = vpop.permute.xlu0 %373
  %375 = vrot.lane.b32.xlu0 %v370, 56
  %v376 = vpop.permute.xlu0 %375
  %v380 = vsel %vm164, %v17, %v213
  %v381 = vsel %vm164, %v18, %v215
  %v382 = vsel %vm164, %v19, %v217
  %v383 = vsel %vm167, %v380, %v225
  %v384 = vsel %vm167, %v381, %v227
  %v385 = vsel %vm167, %v382, %v229
  %v386 = vsel %vm170, %v383, %v240
  %v387 = vsel %vm170, %v384, %v242
  %v388 = vsel %vm170, %v385, %v244
  %v389 = vsel %vm173, %v386, %v254
  %v390 = vsel %vm173, %v387, %v256
  %v391 = vsel %vm173, %v388, %v258
  %v392 = vsel %vm176, %v389, %v268
  %v393 = vsel %vm176, %v390, %v270
  %v394 = vsel %vm176, %v391, %v272
  %v395 = vsel %vm179, %v392, %v282
  %v396 = vsel %vm179, %v393, %v284
  %v397 = vsel %vm179, %v394, %v286
  %v398 = vsel %vm182, %v395, %v296
  %v399 = vsel %vm182, %v396, %v298
  %v400 = vsel %vm182, %v397, %v300
  %v401 = vsel %vm185, %v398, %v305
  %v402 = vsel %vm185, %v399, %v307
  %v403 = vsel %vm185, %v400, %v309
  %v404 = vsel %vm188, %v401, %v316
  %v405 = vsel %vm188, %v402, %v318
  %v406 = vsel %vm188, %v403, %v320
  %v407 = vsel %vm191, %v404, %v327
  %v408 = vsel %vm191, %v405, %v329
  %v409 = vsel %vm191, %v406, %v331
  %v410 = vsel %vm194, %v407, %v339
  %v411 = vsel %vm194, %v408, %v341
  %v412 = vsel %vm194, %v409, %v343
  %v413 = vsel %vm197, %v410, %v350
  %v414 = vsel %vm197, %v411, %v352
  %v415 = vsel %vm197, %v412, %v354
  %v416 = vsel %vm200, %v413, %v361
  %v417 = vsel %vm200, %v414, %v363
  %v418 = vsel %vm200, %v415, %v365
  %v419 = vsel %vm203, %v416, %v372
  %v420 = vsel %vm203, %v417, %v374
  %v421 = vsel %vm203, %v418, %v376
  %v425 = vrot.slane %v419, 6
  %v426 = vrot.slane %v420, 6
  %v427 = vsel %vm85, %v425, %v426
  %v428 = vrot.slane %v421, 6
  %v429 = vsel %vm85, %v426, %v428
  %432 = vrot.lane.b32.xlu0 %v204, 1
  %v433 = vpop.permute.xlu0 %432
  %434 = vrot.lane.b32.xlu0 %v205, 1
  %v435 = vpop.permute.xlu0 %434
  %436 = vrot.lane.b32.xlu0 %v427, 1
  %v437 = vpop.permute.xlu0 %436
  %438 = vrot.lane.b32.xlu0 %v429, 1
  %v439 = vpop.permute.xlu0 %438
  %vm444 = vcmask 7168
  %v445 = vsel %vm444, 1.0, %v433
  %v446 = vsel %vm444, 1.0, %v435
  %v447 = vsel %vm444, 1.0, %v437
  %v448 = vsel %vm444, 1.0, %v439
  %v449 = vld [vmem:[%s1] sm:$0xff]
  %v450 = vld [vmem:[%s1 + $0x8] sm:$0xff]
  %v451 = vld [vmem:[%s1 + $0x10] sm:$0xff]
  %v452 = vld [vmem:[%s1 + $0x18] sm:$0xff]
  %v453 = vld [vmem:[%s1 + $0x20] sm:$0xff]
  %v454 = vld [vmem:[%s1 + $0x28] sm:$0xff]
  %v455 = vld [vmem:[%s1 + $0x30] sm:$0xff]
  %v456 = vld [vmem:[%s1 + $0x38] sm:$0x1f]
  %vm457 = vcmask 498688
  %v459 = vsel %vm457, %v445, 0
  %v462 = vsel %vm457, %v446, 0
  %v465 = vsel %vm457, %v447, 0
  %v468 = vsel %vm457, %v448, 0
  %v471 = vsel %vm49, %v456, 0
  %473 = vmatprep.subr.mxu0 0.0
  %474 = vmatpush1.msra.mxu0 %v449
  %475 = vmatprep.subr.mxu0 0.0
  %476 = vmatpush1.msra.mxu0 %v450
  %477 = vmatprep.subr.mxu0 0.0
  %478 = vmatpush1.msra.mxu0 %v451
  %479 = vmatprep.subr.mxu0 0.0
  %480 = vmatpush1.msra.mxu0 %v452
  %481 = vmatprep.subr.mxu0 0.0
  %482 = vmatpush1.msra.mxu0 %v453
  %483 = vmatprep.subr.mxu0 0.0
  %484 = vmatpush1.msra.mxu0 %v454
  %485 = vmatprep.subr.mxu0 0.0
  %486 = vmatpush1.msra.mxu0 %v455
  %487 = vmatprep.subr.mxu0 0.0
  %488 = vmatpush1.msra.mxu0 %v471
  %489 = vmatprep.subr.mxu0 0.0
  %490 = vmatpush1.msra.mxu0 0.0
  %491 = vmatprep.subr.mxu0 0.0
  %492 = vmatpush1.msra.mxu0 0.0
  %493 = vmatprep.subr.mxu0 0.0
  %494 = vmatpush1.msra.mxu0 0.0
  %495 = vmatprep.subr.mxu0 0.0
  %496 = vmatpush1.msra.mxu0 0.0
  %497 = vmatprep.subr.mxu0 0.0
  %498 = vmatpush1.msra.mxu0 0.0
  %499 = vmatprep.subr.mxu0 0.0
  %500 = vmatpush1.msra.mxu0 0.0
  %501 = vmatprep.subr.mxu0 0.0
  %502 = vmatpush1.msra.mxu0 0.0
  %503 = vmatprep.subr.mxu0 0.0
  %504 = vmatpush1.msra.mxu0 0.0
  %505 = vmatprep.subr.mxu0 0.0
  %506 = vmatpush1.msra.mxu0 0.0
  %507 = vmatprep.subr.mxu0 0.0
  %508 = vmatpush1.msra.mxu0 0.0
  %509 = vmatprep.subr.mxu0 0.0
  %510 = vmatpush1.msra.mxu0 0.0
  %511 = vmatprep.subr.mxu0 0.0
  %512 = vmatpush1.msra.mxu0 0.0
  %513 = vmatprep.subr.mxu0 0.0
  %514 = vmatpush1.msra.mxu0 0.0
  %515 = vmatprep.subr.mxu0 0.0
  %516 = vmatpush1.msra.mxu0 0.0
  %517 = vmatprep.subr.mxu0 0.0
  %518 = vmatpush1.msra.mxu0 0.0
  %519 = vmatprep.subr.mxu0 0.0
  %520 = vmatpush1.msra.mxu0 0.0
  %521 = vmatprep.subr.mxu0 0.0
  %522 = vmatpush1.msra.mxu0 0.0
  %523 = vmatprep.subr.mxu0 0.0
  %524 = vmatpush1.msra.mxu0 0.0
  %525 = vmatprep.subr.mxu0 0.0
  %526 = vmatpush1.msra.mxu0 0.0
  %527 = vmatprep.subr.mxu0 0.0
  %528 = vmatpush1.msra.mxu0 0.0
  %529 = vmatprep.subr.mxu0 0.0
  %530 = vmatpush1.msra.mxu0 0.0
  %531 = vmatprep.subr.mxu0 0.0
  %532 = vmatpush1.msra.mxu0 0.0
  %533 = vmatprep.subr.mxu0 0.0
  %534 = vmatpush1.msra.mxu0 0.0
  %535 = vmatprep.subr.mxu0 0.0
  %536 = vmatpush1.msra.mxu0 0.0
  %537 = vmatprep.mubr.f32.mxu0 0.0
  %538 = vmatmul.mubr.f32.gmra.mrb[0].mxu0 %v459
  %v539 = vpop.f32.mrb[0].mxu0
  %v540 = vadd.f32 0.0, %v539
  %v541 = vpop.f32.mrb[0].mxu0
  %542 = vmatprep.mubr.f32.mxu0 0.0
  %543 = vmatmul.mubr.f32.gmra.mrb[0].mxu0 %v462
  %v544 = vpop.f32.mrb[0].mxu0
  %v545 = vadd.f32 0.0, %v544
  %v546 = vpop.f32.mrb[0].mxu0
  %547 = vmatprep.mubr.f32.mxu0 0.0
  %548 = vmatmul.mubr.f32.gmra.mrb[0].mxu0 %v465
  %v549 = vpop.f32.mrb[0].mxu0
  %v550 = vadd.f32 0.0, %v549
  %v551 = vpop.f32.mrb[0].mxu0
  %552 = vmatprep.mubr.f32.mxu0 0.0
  %553 = vmatmul.mubr.f32.gmra.mrb[0].mxu0 %v468
  %v554 = vpop.f32.mrb[0].mxu0
  %v555 = vadd.f32 0.0, %v554
  %v556 = vpop.f32.mrb[0].mxu0
  %557 = vdwg.mxu0
  %vm558 = vcmp.gt.f32.partialorder %v540, 0.0
  %vm559 = vcmp.gt.f32.partialorder %v545, 0.0
  %vm560 = vcmp.gt.f32.partialorder %v550, 0.0
  %vm561 = vcmp.gt.f32.partialorder %v555, 0.0
  %v562 = vmul.f32 %v540, 0.2
  %v563 = vmul.f32 %v545, 0.2
  %v564 = vmul.f32 %v550, 0.2
  %v565 = vmul.f32 %v555, 0.2
  %v566 = vsel %vm558, %v540, %v562
  %v567 = vsel %vm559, %v545, %v563
  %v568 = vsel %vm560, %v550, %v564
  %v569 = vsel %vm561, %v555, %v565
  %v572 = vrot.slane %v566, 6
  %v573 = vrot.slane %v567, 6
  %v574 = vsel %vm85, %v572, %v573
  %575 = vrot.lane.b32.xlu0 %v572, 96
  %v576 = vpop.permute.xlu0 %575
  %577 = vrot.lane.b32.xlu0 %v574, 96
  %v578 = vpop.permute.xlu0 %577
  %579 = vrot.lane.b32.xlu0 %v573, 96
  %v580 = vpop.permute.xlu0 %579
  %v584 = vsel %vm85, 0.0, %v576
  %v585 = vsel %vm85, %v580, 0.0
  %v588 = vrot.slane 0.0, 1
  %v589 = vrot.slane %v584, 1
  %v590 = vsel %vm25, %v588, %v589
  %v591 = vrot.slane %v578, 1
  %v592 = vsel %vm25, %v589, %v591
  %593 = vrot.lane.b32.xlu0 %v590, 32
  %v594 = vpop.permute.xlu0 %593
  %595 = vrot.lane.b32.xlu0 %v592, 32
  %v596 = vpop.permute.xlu0 %595
  %v599 = vrot.slane 0.0, 2
  %v600 = vrot.slane %v584, 2
  %v601 = vsel %vm37, %v599, %v600
  %v602 = vrot.slane %v578, 2
  %v603 = vsel %vm37, %v600, %v602
  %604 = vrot.lane.b32.xlu0 %v601, 64
  %v605 = vpop.permute.xlu0 %604
  %606 = vrot.lane.b32.xlu0 %v603, 64
  %v607 = vpop.permute.xlu0 %606
  %v610 = vrot.slane 0.0, 3
  %v611 = vrot.slane %v584, 3
  %v612 = vsel %vm49, %v610, %v611
  %v613 = vrot.slane %v578, 3
  %v614 = vsel %vm49, %v611, %v613
  %615 = vrot.lane.b32.xlu0 %v612, 96
  %v616 = vpop.permute.xlu0 %615
  %617 = vrot.lane.b32.xlu0 %v614, 96
  %v618 = vpop.permute.xlu0 %617
  %v621 = vrot.slane 0.0, 4
  %v622 = vrot.slane %v584, 4
  %v623 = vsel %vm61, %v621, %v622
  %v624 = vrot.slane %v578, 4
  %v625 = vsel %vm61, %v622, %v624
  %v628 = vrot.slane 0.0, 5
  %v629 = vrot.slane %v584, 5
  %v630 = vsel %vm73, %v628, %v629
  %v631 = vrot.slane %v578, 5
  %v632 = vsel %vm73, %v629, %v631
  %633 = vrot.lane.b32.xlu0 %v630, 32
  %v634 = vpop.permute.xlu0 %633
  %635 = vrot.lane.b32.xlu0 %v632, 32
  %v636 = vpop.permute.xlu0 %635
  %v639 = vrot.slane 0.0, 6
  %v640 = vrot.slane %v584, 6
  %v641 = vsel %vm85, %v639, %v640
  %v642 = vrot.slane %v578, 6
  %v643 = vsel %vm85, %v640, %v642
  %644 = vrot.lane.b32.xlu0 %v641, 64
  %v645 = vpop.permute.xlu0 %644
  %646 = vrot.lane.b32.xlu0 %v643, 64
  %v647 = vpop.permute.xlu0 %646
  %v650 = vrot.slane 0.0, 7
  %v651 = vrot.slane %v584, 7
  %v652 = vsel %vm97, %v650, %v651
  %v653 = vrot.slane %v578, 7
  %v654 = vsel %vm97, %v651, %v653
  %655 = vrot.lane.b32.xlu0 %v652, 96
  %v656 = vpop.permute.xlu0 %655
  %657 = vrot.lane.b32.xlu0 %v654, 96
  %v658 = vpop.permute.xlu0 %657
  %v662 = vrot.slane %v585, 1
  %v663 = vsel %vm25, %v591, %v662
  %664 = vrot.lane.b32.xlu0 %v663, 32
  %v665 = vpop.permute.xlu0 %664
  %v667 = vrot.slane %v585, 2
  %v668 = vsel %vm37, %v602, %v667
  %669 = vrot.lane.b32.xlu0 %v668, 64
  %v670 = vpop.permute.xlu0 %669
  %v672 = vrot.slane %v585, 3
  %v673 = vsel %vm49, %v613, %v672
  %674 = vrot.lane.b32.xlu0 %v673, 96
  %v675 = vpop.permute.xlu0 %674
  %v677 = vrot.slane %v585, 4
  %v678 = vsel %vm61, %v624, %v677
  %v680 = vrot.slane %v585, 5
  %v681 = vsel %vm73, %v631, %v680
  %682 = vrot.lane.b32.xlu0 %v681, 32
  %v683 = vpop.permute.xlu0 %682
  %v685 = vrot.slane %v585, 6
  %v686 = vsel %vm85, %v642, %v685
  %687 = vrot.lane.b32.xlu0 %v686, 64
  %v688 = vpop.permute.xlu0 %687
  %v690 = vrot.slane %v585, 7
  %v691 = vsel %vm97, %v653, %v690
  %692 = vrot.lane.b32.xlu0 %v691, 96
  %v693 = vpop.permute.xlu0 %692
  %v695 = vsel %vm185, 0.0, %v594
  %v696 = vsel %vm185, %v584, %v596
  %vm697 = vcmask 523264
  %v698 = vsel %vm697, %v695, %v605
  %v699 = vsel %vm697, %v696, %v607
  %vm700 = vcmask 785408
  %v701 = vsel %vm700, %v698, %v616
  %v702 = vsel %vm700, %v699, %v618
  %v703 = vsel %vm185, %v623, %v634
  %v704 = vsel %vm185, %v625, %v636
  %v705 = vsel %vm697, %v703, %v645
  %v706 = vsel %vm697, %v704, %v647
  %v707 = vsel %vm700, %v705, %v656
  %v708 = vsel %vm700, %v706, %v658
  %v709 = vsel %vm185, %v578, %v665
  %v710 = vsel %vm697, %v709, %v670
  %v711 = vsel %vm700, %v710, %v675
  %v712 = vsel %vm185, %v678, %v683
  %v713 = vsel %vm697, %v712, %v688
  %v714 = vsel %vm700, %v713, %v693
  %v715 = vsel %vm25, %v662, %v588
  %716 = vrot.lane.b32.xlu0 %v715, 32
  %v717 = vpop.permute.xlu0 %716
  %v719 = vsel %vm37, %v667, %v599
  %720 = vrot.lane.b32.xlu0 %v719, 64
  %v721 = vpop.permute.xlu0 %720
  %v723 = vsel %vm49, %v672, %v610
  %724 = vrot.lane.b32.xlu0 %v723, 96
  %v725 = vpop.permute.xlu0 %724
  %v727 = vsel %vm61, %v677, %v621
  %v728 = vsel %vm185, %v585, %v717
  %v729 = vsel %vm697, %v728, %v721
  %v730 = vsel %vm700, %v729, %v725
  %v733 = vrot.slane %v568, 6
  %v734 = vrot.slane %v569, 6
  %v735 = vsel %vm85, %v733, %v734
  %736 = vrot.lane.b32.xlu0 %v733, 96
  %v737 = vpop.permute.xlu0 %736
  %738 = vrot.lane.b32.xlu0 %v735, 96
  %v739 = vpop.permute.xlu0 %738
  %740 = vrot.lane.b32.xlu0 %v734, 96
  %v741 = vpop.permute.xlu0 %740
  %v745 = vsel %vm85, 0.0, %v737
  %v746 = vsel %vm85, %v741, 0.0
  %v748 = vrot.slane %v745, 1
  %v749 = vsel %vm25, %v588, %v748
  %v750 = vrot.slane %v739, 1
  %v751 = vsel %vm25, %v748, %v750
  %752 = vrot.lane.b32.xlu0 %v749, 32
  %v753 = vpop.permute.xlu0 %752
  %754 = vrot.lane.b32.xlu0 %v751, 32
  %v755 = vpop.permute.xlu0 %754
  %v758 = vrot.slane %v745, 2
  %v759 = vsel %vm37, %v599, %v758
  %v760 = vrot.slane %v739, 2
  %v761 = vsel %vm37, %v758, %v760
  %762 = vrot.lane.b32.xlu0 %v759, 64
  %v763 = vpop.permute.xlu0 %762
  %764 = vrot.lane.b32.xlu0 %v761, 64
  %v765 = vpop.permute.xlu0 %764
  %v768 = vrot.slane %v745, 3
  %v769 = vsel %vm49, %v610, %v768
  %v770 = vrot.slane %v739, 3
  %v771 = vsel %vm49, %v768, %v770
  %772 = vrot.lane.b32.xlu0 %v769, 96
  %v773 = vpop.permute.xlu0 %772
  %774 = vrot.lane.b32.xlu0 %v771, 96
  %v775 = vpop.permute.xlu0 %774
  %v778 = vrot.slane %v745, 4
  %v779 = vsel %vm61, %v621, %v778
  %v780 = vrot.slane %v739, 4
  %v781 = vsel %vm61, %v778, %v780
  %v784 = vrot.slane %v745, 5
  %v785 = vsel %vm73, %v628, %v784
  %v786 = vrot.slane %v739, 5
  %v787 = vsel %vm73, %v784, %v786
  %788 = vrot.lane.b32.xlu0 %v785, 32
  %v789 = vpop.permute.xlu0 %788
  %790 = vrot.lane.b32.xlu0 %v787, 32
  %v791 = vpop.permute.xlu0 %790
  %v794 = vrot.slane %v745, 6
  %v795 = vsel %vm85, %v639, %v794
  %v796 = vrot.slane %v739, 6
  %v797 = vsel %vm85, %v794, %v796
  %798 = vrot.lane.b32.xlu0 %v795, 64
  %v799 = vpop.permute.xlu0 %798
  %800 = vrot.lane.b32.xlu0 %v797, 64
  %v801 = vpop.permute.xlu0 %800
  %v804 = vrot.slane %v745, 7
  %v805 = vsel %vm97, %v650, %v804
  %v806 = vrot.slane %v739, 7
  %v807 = vsel %vm97, %v804, %v806
  %808 = vrot.lane.b32.xlu0 %v805, 96
  %v809 = vpop.permute.xlu0 %808
  %810 = vrot.lane.b32.xlu0 %v807, 96
  %v811 = vpop.permute.xlu0 %810
  %v815 = vrot.slane %v746, 1
  %v816 = vsel %vm25, %v750, %v815
  %817 = vrot.lane.b32.xlu0 %v816, 32
  %v818 = vpop.permute.xlu0 %817
  %v820 = vrot.slane %v746, 2
  %v821 = vsel %vm37, %v760, %v820
  %822 = vrot.lane.b32.xlu0 %v821, 64
  %v823 = vpop.permute.xlu0 %822
  %v825 = vrot.slane %v746, 3
  %v826 = vsel %vm49, %v770, %v825
  %827 = vrot.lane.b32.xlu0 %v826, 96
  %v828 = vpop.permute.xlu0 %827
  %v830 = vrot.slane %v746, 4
  %v831 = vsel %vm61, %v780, %v830
  %v833 = vrot.slane %v746, 5
  %v834 = vsel %vm73, %v786, %v833
  %835 = vrot.lane.b32.xlu0 %v834, 32
  %v836 = vpop.permute.xlu0 %835
  %v838 = vrot.slane %v746, 6
  %v839 = vsel %vm85, %v796, %v838
  %840 = vrot.lane.b32.xlu0 %v839, 64
  %v841 = vpop.permute.xlu0 %840
  %v843 = vrot.slane %v746, 7
  %v844 = vsel %vm97, %v806, %v843
  %845 = vrot.lane.b32.xlu0 %v844, 96
  %v846 = vpop.permute.xlu0 %845
  %v848 = vsel %vm185, 0.0, %v753
  %v849 = vsel %vm185, %v745, %v755
  %v850 = vsel %vm697, %v848, %v763
  %v851 = vsel %vm697, %v849, %v765
  %v852 = vsel %vm700, %v850, %v773
  %v853 = vsel %vm700, %v851, %v775
  %v854 = vsel %vm185, %v779, %v789
  %v855 = vsel %vm185, %v781, %v791
  %v856 = vsel %vm697, %v854, %v799
  %v857 = vsel %vm697, %v855, %v801
  %v858 = vsel %vm700, %v856, %v809
  %v859 = vsel %vm700, %v857, %v811
  %v860 = vsel %vm185, %v739, %v818
  %v861 = vsel %vm697, %v860, %v823
  %v862 = vsel %vm700, %v861, %v828
  %v863 = vsel %vm185, %v831, %v836
  %v864 = vsel %vm697, %v863, %v841
  %v865 = vsel %vm700, %v864, %v846
  %v866 = vsel %vm25, %v815, %v588
  %867 = vrot.lane.b32.xlu0 %v866, 32
  %v868 = vpop.permute.xlu0 %867
  %v870 = vsel %vm37, %v820, %v599
  %871 = vrot.lane.b32.xlu0 %v870, 64
  %v872 = vpop.permute.xlu0 %871
  %v874 = vsel %vm49, %v825, %v610
  %875 = vrot.lane.b32.xlu0 %v874, 96
  %v876 = vpop.permute.xlu0 %875
  %v878 = vsel %vm61, %v830, %v621
  %v879 = vsel %vm185, %v746, %v868
  %v880 = vsel %vm697, %v879, %v872
  %v881 = vsel %vm700, %v880, %v876
  %v882 = vld [vmem:[%s2] sm:$0xff]
  %v883 = vld [vmem:[%s2 + $0x8] sm:$0xff]
  %v884 = vld [vmem:[%s2 + $0x10] sm:$0xff]
  %v885 = vld [vmem:[%s2 + $0x18] sm:$0xff]
  %v886 = vld [vmem:[%s2 + $0x20] sm:$0xff]
  %v887 = vld [vmem:[%s2 + $0x28] sm:$0xff]
  %v888 = vld [vmem:[%s2 + $0x30] sm:$0xff]
  %v889 = vld [vmem:[%s2 + $0x38] sm:$0xff]
  %v890 = vld [vmem:[%s2 + $0x40] sm:$0xff]
  %v891 = vld [vmem:[%s2 + $0x48] sm:$0xff]
  %v892 = vld [vmem:[%s2 + $0x50] sm:$0xff]
  %v893 = vld [vmem:[%s2 + $0x58] sm:$0xff]
  %v894 = vld [vmem:[%s2 + $0x60] sm:$0xff]
  %v895 = vld [vmem:[%s2 + $0x68] sm:$0xff]
  %v896 = vld [vmem:[%s2 + $0x70] sm:$0xff]
  %v897 = vld [vmem:[%s2 + $0x78] sm:$0xff]
  %v898 = vld [vmem:[%s2 + $0x80] sm:$0xff]
  %v899 = vld [vmem:[%s2 + $0x88] sm:$0xff]
  %v900 = vld [vmem:[%s2 + $0x90] sm:$0xff]
  %v901 = vld [vmem:[%s2 + $0x98] sm:$0xff]
  %v902 = vld [vmem:[%s2 + $0xa0] sm:$0xff]
  %v903 = vld [vmem:[%s2 + $0xa8] sm:$0xff]
  %v904 = vld [vmem:[%s2 + $0xb0] sm:$0xff]
  %v905 = vld [vmem:[%s2 + $0xb8] sm:$0xff]
  %v906 = vld [vmem:[%s2 + $0xc0] sm:$0xff]
  %v907 = vld [vmem:[%s2 + $0xc8] sm:$0xff]
  %v908 = vld [vmem:[%s2 + $0xd0] sm:$0xff]
  %v909 = vld [vmem:[%s2 + $0xd8] sm:$0xff]
  %v910 = vld [vmem:[%s2 + $0xe0] sm:$0xff]
  %v911 = vld [vmem:[%s2 + $0xe8] sm:$0xff]
  %v912 = vld [vmem:[%s2 + $0xf0] sm:$0xff]
  %v913 = vld [vmem:[%s2 + $0xf8] sm:$0xff]
  %v914 = vld [vmem:[%s2 + $0x100] sm:$0xff]
  %v915 = vld [vmem:[%s2 + $0x108] sm:$0xff]
  %v916 = vld [vmem:[%s2 + $0x110] sm:$0xff]
  %v917 = vld [vmem:[%s2 + $0x118] sm:$0xff]
  %v918 = vld [vmem:[%s2 + $0x120] sm:$0xff]
  %v919 = vld [vmem:[%s2 + $0x128] sm:$0xff]
  %v920 = vld [vmem:[%s2 + $0x130] sm:$0xff]
  %v921 = vld [vmem:[%s2 + $0x138] sm:$0xff]
  %v922 = vld [vmem:[%s2 + $0x140] sm:$0xff]
  %v923 = vld [vmem:[%s2 + $0x148] sm:$0xff]
  %v924 = vld [vmem:[%s2 + $0x150] sm:$0xff]
  %v925 = vld [vmem:[%s2 + $0x158] sm:$0xff]
  %v926 = vld [vmem:[%s2 + $0x160] sm:$0xff]
  %v927 = vld [vmem:[%s2 + $0x168] sm:$0xff]
  %v928 = vld [vmem:[%s2 + $0x170] sm:$0xff]
  %v929 = vld [vmem:[%s2 + $0x178] sm:$0xff]
  %v930 = vld [vmem:[%s2 + $0x180] sm:$0xff]
  %v931 = vld [vmem:[%s2 + $0x188] sm:$0xff]
  %v932 = vld [vmem:[%s2 + $0x190] sm:$0xff]
  %v933 = vld [vmem:[%s2 + $0x198] sm:$0xff]
  %v934 = vld [vmem:[%s2 + $0x1a0] sm:$0xff]
  %v935 = vld [vmem:[%s2 + $0x1a8] sm:$0xff]
  %v936 = vld [vmem:[%s2 + $0x1b0] sm:$0xff]
  %v937 = vld [vmem:[%s2 + $0x1b8] sm:$0xff]
  %v938 = vld [vmem:[%s2 + $0x1c0] sm:$0xff]
  %v939 = vld [vmem:[%s2 + $0x1c8] sm:$0xff]
  %v940 = vld [vmem:[%s2 + $0x1d0] sm:$0xff]
  %v941 = vld [vmem:[%s2 + $0x1d8] sm:$0xff]
  %v942 = vld [vmem:[%s2 + $0x1e0] sm:$0xff]
  %v943 = vld [vmem:[%s2 + $0x1e8] sm:$0xff]
  %v944 = vld [vmem:[%s2 + $0x1f0] sm:$0xff]
  %v945 = vld [vmem:[%s2 + $0x1f8] sm:$0xff]
  %v946 = vld [vmem:[%s2 + $0x200] sm:$0xff]
  %v947 = vld [vmem:[%s2 + $0x208] sm:$0xff]
  %v948 = vld [vmem:[%s2 + $0x210] sm:$0xff]
  %v949 = vld [vmem:[%s2 + $0x218] sm:$0xff]
  %v950 = vld [vmem:[%s2 + $0x220] sm:$0xff]
  %v951 = vld [vmem:[%s2 + $0x228] sm:$0xff]
  %v952 = vld [vmem:[%s2 + $0x230] sm:$0xff]
  %v953 = vld [vmem:[%s2 + $0x238] sm:$0xff]
  %v954 = vld [vmem:[%s2 + $0x240] sm:$0xff]
  %v955 = vld [vmem:[%s2 + $0x248] sm:$0xff]
  %v956 = vld [vmem:[%s2 + $0x250] sm:$0xff]
  %v957 = vld [vmem:[%s2 + $0x258] sm:$0xff]
  %v958 = vld [vmem:[%s2 + $0x260] sm:$0xff]
  %v959 = vld [vmem:[%s2 + $0x268] sm:$0xff]
  %v960 = vld [vmem:[%s2 + $0x270] sm:$0xff]
  %v961 = vld [vmem:[%s2 + $0x278] sm:$0xff]
  %v962 = vld [vmem:[%s2 + $0x280] sm:$0xff]
  %v963 = vld [vmem:[%s2 + $0x288] sm:$0xff]
  %v964 = vld [vmem:[%s2 + $0x290] sm:$0xff]
  %v965 = vld [vmem:[%s2 + $0x298] sm:$0xff]
  %v966 = vsel %vm185, %v678, 0
  %v968 = vsel %vm185, %v727, 0
  %v970 = vsel %vm185, %v831, 0
  %v972 = vsel %vm185, %v878, 0
  %974 = vmatprep.subr.mxu0 0.0
  %975 = vmatpush1.msra.mxu0 %v882
  %976 = vmatprep.subr.mxu0 0.0
  %977 = vmatpush1.msra.mxu0 %v883
  %978 = vmatprep.subr.mxu0 0.0
  %979 = vmatpush1.msra.mxu0 %v884
  %980 = vmatprep.subr.mxu0 0.0
  %981 = vmatpush1.msra.mxu0 %v885
  %982 = vmatprep.subr.mxu0 0.0
  %983 = vmatpush1.msra.mxu0 %v886
  %984 = vmatprep.subr.mxu0 0.0
  %985 = vmatpush1.msra.mxu0 %v887
  %986 = vmatprep.subr.mxu0 0.0
  %987 = vmatpush1.msra.mxu0 %v888
  %988 = vmatprep.subr.mxu0 0.0
  %989 = vmatpush1.msra.mxu0 %v889
  %990 = vmatprep.subr.mxu0 0.0
  %991 = vmatpush1.msra.mxu0 %v890
  %992 = vmatprep.subr.mxu0 0.0
  %993 = vmatpush1.msra.mxu0 %v891
  %994 = vmatprep.subr.mxu0 0.0
  %995 = vmatpush1.msra.mxu0 %v892
  %996 = vmatprep.subr.mxu0 0.0
  %997 = vmatpush1.msra.mxu0 %v893
  %998 = vmatprep.subr.mxu0 0.0
  %999 = vmatpush1.msra.mxu0 %v894
  %1000 = vmatprep.subr.mxu0 0.0
  %1001 = vmatpush1.msra.mxu0 %v895
  %1002 = vmatprep.subr.mxu0 0.0
  %1003 = vmatpush1.msra.mxu0 %v896
  %1004 = vmatprep.subr.mxu0 0.0
  %1005 = vmatpush1.msra.mxu0 %v897
  %1006 = vmatprep.subr.mxu0 0.0
  %1007 = vmatpush1.msra.mxu0 %v898
  %1008 = vmatprep.subr.mxu0 0.0
  %1009 = vmatpush1.msra.mxu0 %v899
  %1010 = vmatprep.subr.mxu0 0.0
  %1011 = vmatpush1.msra.mxu0 %v900
  %1012 = vmatprep.subr.mxu0 0.0
  %1013 = vmatpush1.msra.mxu0 %v901
  %1014 = vmatprep.subr.mxu0 0.0
  %1015 = vmatpush1.msra.mxu0 %v902
  %1016 = vmatprep.subr.mxu0 0.0
  %1017 = vmatpush1.msra.mxu0 %v903
  %1018 = vmatprep.subr.mxu0 0.0
  %1019 = vmatpush1.msra.mxu0 %v904
  %1020 = vmatprep.subr.mxu0 0.0
  %1021 = vmatpush1.msra.mxu0 %v905
  %1022 = vmatprep.subr.mxu0 0.0
  %1023 = vmatpush1.msra.mxu0 %v906
  %1024 = vmatprep.subr.mxu0 0.0
  %1025 = vmatpush1.msra.mxu0 %v907
  %1026 = vmatprep.subr.mxu0 0.0
  %1027 = vmatpush1.msra.mxu0 %v908
  %1028 = vmatprep.subr.mxu0 0.0
  %1029 = vmatpush1.msra.mxu0 %v909
  %1030 = vmatprep.subr.mxu0 0.0
  %1031 = vmatpush1.msra.mxu0 %v910
  %1032 = vmatprep.subr.mxu0 0.0
  %1033 = vmatpush1.msra.mxu0 %v911
  %1034 = vmatprep.subr.mxu0 0.0
  %1035 = vmatpush1.msra.mxu0 %v912
  %1036 = vmatprep.subr.mxu0 0.0
  %1037 = vmatpush1.msra.mxu0 %v913
  %1038 = vmatprep.mubr.f32.mxu0 %v707
  %1039 = vmatmul.mubr.f32.gmra.mrb[0].mxu0 %v701
  %v1040 = vpop.f32.mrb[0].mxu0
  %v1041 = vadd.f32 0.0, %v1040
  %v1042 = vpop.f32.mrb[0].mxu0
  %1043 = vmatprep.mubr.f32.mxu0 %v708
  %1044 = vmatmul.mubr.f32.gmra.mrb[0].mxu0 %v702
  %v1045 = vpop.f32.mrb[0].mxu0
  %v1046 = vadd.f32 0.0, %v1045
  %v1047 = vpop.f32.mrb[0].mxu0
  %1048 = vmatprep.mubr.f32.mxu0 %v858
  %1049 = vmatmul.mubr.f32.gmra.mrb[0].mxu0 %v852
  %v1050 = vpop.f32.mrb[0].mxu0
  %v1051 = vadd.f32 0.0, %v1050
  %v1052 = vpop.f32.mrb[0].mxu0
  %1053 = vmatprep.mubr.f32.mxu0 %v859
  %1054 = vmatmul.mubr.f32.gmra.mrb[0].mxu0 %v853
  %v1055 = vpop.f32.mrb[0].mxu0
  %v1056 = vadd.f32 0.0, %v1055
  %v1057 = vpop.f32.mrb[0].mxu0
  %1058 = vdwg.mxu0
  %1059 = vmatprep.subr.mxu0 0.0
  %1060 = vmatpush1.msra.mxu0 %v914
  %1061 = vmatprep.subr.mxu0 0.0
  %1062 = vmatpush1.msra.mxu0 %v915
  %1063 = vmatprep.subr.mxu0 0.0
  %1064 = vmatpush1.msra.mxu0 %v916
  %1065 = vmatprep.subr.mxu0 0.0
  %1066 = vmatpush1.msra.mxu0 %v917
  %1067 = vmatprep.subr.mxu0 0.0
  %1068 = vmatpush1.msra.mxu0 %v918
  %1069 = vmatprep.subr.mxu0 0.0
  %1070 = vmatpush1.msra.mxu0 %v919
  %1071 = vmatprep.subr.mxu0 0.0
  %1072 = vmatpush1.msra.mxu0 %v920
  %1073 = vmatprep.subr.mxu0 0.0
  %1074 = vmatpush1.msra.mxu0 %v921
  %1075 = vmatprep.subr.mxu0 0.0
  %1076 = vmatpush1.msra.mxu0 %v922
  %1077 = vmatprep.subr.mxu0 0.0
  %1078 = vmatpush1.msra.mxu0 %v923
  %1079 = vmatprep.subr.mxu0 0.0
  %1080 = vmatpush1.msra.mxu0 %v924
  %1081 = vmatprep.subr.mxu0 0.0
  %1082 = vmatpush1.msra.mxu0 %v925
  %1083 = vmatprep.subr.mxu0 0.0
  %1084 = vmatpush1.msra.mxu0 %v926
  %1085 = vmatprep.subr.mxu0 0.0
  %1086 = vmatpush1.msra.mxu0 %v927
  %1087 = vmatprep.subr.mxu0 0.0
  %1088 = vmatpush1.msra.mxu0 %v928
  %1089 = vmatprep.subr.mxu0 0.0
  %1090 = vmatpush1.msra.mxu0 %v929
  %1091 = vmatprep.subr.mxu0 0.0
  %1092 = vmatpush1.msra.mxu0 %v930
  %1093 = vmatprep.subr.mxu0 0.0
  %1094 = vmatpush1.msra.mxu0 %v931
  %1095 = vmatprep.subr.mxu0 0.0
  %1096 = vmatpush1.msra.mxu0 %v932
  %1097 = vmatprep.subr.mxu0 0.0
  %1098 = vmatpush1.msra.mxu0 %v933
  %1099 = vmatprep.subr.mxu0 0.0
  %1100 = vmatpush1.msra.mxu0 %v934
  %1101 = vmatprep.subr.mxu0 0.0
  %1102 = vmatpush1.msra.mxu0 %v935
  %1103 = vmatprep.subr.mxu0 0.0
  %1104 = vmatpush1.msra.mxu0 %v936
  %1105 = vmatprep.subr.mxu0 0.0
  %1106 = vmatpush1.msra.mxu0 %v937
  %1107 = vmatprep.subr.mxu0 0.0
  %1108 = vmatpush1.msra.mxu0 %v938
  %1109 = vmatprep.subr.mxu0 0.0
  %1110 = vmatpush1.msra.mxu0 %v939
  %1111 = vmatprep.subr.mxu0 0.0
  %1112 = vmatpush1.msra.mxu0 %v940
  %1113 = vmatprep.subr.mxu0 0.0
  %1114 = vmatpush1.msra.mxu0 %v941
  %1115 = vmatprep.subr.mxu0 0.0
  %1116 = vmatpush1.msra.mxu0 %v942
  %1117 = vmatprep.subr.mxu0 0.0
  %1118 = vmatpush1.msra.mxu0 %v943
  %1119 = vmatprep.subr.mxu0 0.0
  %1120 = vmatpush1.msra.mxu0 %v944
  %1121 = vmatprep.subr.mxu0 0.0
  %1122 = vmatpush1.msra.mxu0 %v945
  %1123 = vmatprep.mubr.f32.mxu0 %v708
  %1124 = vmatmul.mubr.f32.gmra.mrb[0].mxu0 %v702
  %v1125 = vpop.f32.mrb[0].mxu0
  %v1126 = vadd.f32 %v1041, %v1125
  %v1127 = vpop.f32.mrb[0].mxu0
  %1128 = vmatprep.mubr.f32.mxu0 %v714
  %1129 = vmatmul.mubr.f32.gmra.mrb[0].mxu0 %v711
  %v1130 = vpop.f32.mrb[0].mxu0
  %v1131 = vadd.f32 %v1046, %v1130
  %v1132 = vpop.f32.mrb[0].mxu0
  %1133 = vmatprep.mubr.f32.mxu0 %v859
  %1134 = vmatmul.mubr.f32.gmra.mrb[0].mxu0 %v853
  %v1135 = vpop.f32.mrb[0].mxu0
  %v1136 = vadd.f32 %v1051, %v1135
  %v1137 = vpop.f32.mrb[0].mxu0
  %1138 = vmatprep.mubr.f32.mxu0 %v865
  %1139 = vmatmul.mubr.f32.gmra.mrb[0].mxu0 %v862
  %v1140 = vpop.f32.mrb[0].mxu0
  %v1141 = vadd.f32 %v1056, %v1140
  %v1142 = vpop.f32.mrb[0].mxu0
  %1143 = vdwg.mxu0
  %1144 = vmatprep.subr.mxu0 0.0
  %1145 = vmatpush1.msra.mxu0 %v946
  %1146 = vmatprep.subr.mxu0 0.0
  %1147 = vmatpush1.msra.mxu0 %v947
  %1148 = vmatprep.subr.mxu0 0.0
  %1149 = vmatpush1.msra.mxu0 %v948
  %1150 = vmatprep.subr.mxu0 0.0
  %1151 = vmatpush1.msra.mxu0 %v949
  %1152 = vmatprep.subr.mxu0 0.0
  %1153 = vmatpush1.msra.mxu0 %v950
  %1154 = vmatprep.subr.mxu0 0.0
  %1155 = vmatpush1.msra.mxu0 %v951
  %1156 = vmatprep.subr.mxu0 0.0
  %1157 = vmatpush1.msra.mxu0 %v952
  %1158 = vmatprep.subr.mxu0 0.0
  %1159 = vmatpush1.msra.mxu0 %v953
  %1160 = vmatprep.subr.mxu0 0.0
  %1161 = vmatpush1.msra.mxu0 %v954
  %1162 = vmatprep.subr.mxu0 0.0
  %1163 = vmatpush1.msra.mxu0 %v955
  %1164 = vmatprep.subr.mxu0 0.0
  %1165 = vmatpush1.msra.mxu0 %v956
  %1166 = vmatprep.subr.mxu0 0.0
  %1167 = vmatpush1.msra.mxu0 %v957
  %1168 = vmatprep.subr.mxu0 0.0
  %1169 = vmatpush1.msra.mxu0 %v958
  %1170 = vmatprep.subr.mxu0 0.0
  %1171 = vmatpush1.msra.mxu0 %v959
  %1172 = vmatprep.subr.mxu0 0.0
  %1173 = vmatpush1.msra.mxu0 %v960
  %1174 = vmatprep.subr.mxu0 0.0
  %1175 = vmatpush1.msra.mxu0 %v961
  %1176 = vmatprep.subr.mxu0 0.0
  %1177 = vmatpush1.msra.mxu0 %v962
  %1178 = vmatprep.subr.mxu0 0.0
  %1179 = vmatpush1.msra.mxu0 %v963
  %1180 = vmatprep.subr.mxu0 0.0
  %1181 = vmatpush1.msra.mxu0 %v964
  %1182 = vmatprep.subr.mxu0 0.0
  %1183 = vmatpush1.msra.mxu0 %v965
  %1184 = vmatprep.subr.mxu0 0.0
  %1185 = vmatpush1.msra.mxu0 0.0
  %1186 = vmatprep.subr.mxu0 0.0
  %1187 = vmatpush1.msra.mxu0 0.0
  %1188 = vmatprep.subr.mxu0 0.0
  %1189 = vmatpush1.msra.mxu0 0.0
  %1190 = vmatprep.subr.mxu0 0.0
  %1191 = vmatpush1.msra.mxu0 0.0
  %1192 = vmatprep.subr.mxu0 0.0
  %1193 = vmatpush1.msra.mxu0 0.0
  %1194 = vmatprep.subr.mxu0 0.0
  %1195 = vmatpush1.msra.mxu0 0.0
  %1196 = vmatprep.subr.mxu0 0.0
  %1197 = vmatpush1.msra.mxu0 0.0
  %1198 = vmatprep.subr.mxu0 0.0
  %1199 = vmatpush1.msra.mxu0 0.0
  %1200 = vmatprep.subr.mxu0 0.0
  %1201 = vmatpush1.msra.mxu0 0.0
  %1202 = vmatprep.subr.mxu0 0.0
  %1203 = vmatpush1.msra.mxu0 0.0
  %1204 = vmatprep.subr.mxu0 0.0
  %1205 = vmatpush1.msra.mxu0 0.0
  %1206 = vmatprep.subr.mxu0 0.0
  %1207 = vmatpush1.msra.mxu0 0.0
  %1208 = vmatprep.mubr.f32.mxu0 %v966
  %1209 = vmatmul.mubr.f32.gmra.mrb[0].mxu0 %v711
  %v1210 = vpop.f32.mrb[0].mxu0
  %v1211 = vadd.f32 %v1126, %v1210
  %v1212 = vpop.f32.mrb[0].mxu0
  %1213 = vmatprep.mubr.f32.mxu0 %v968
  %1214 = vmatmul.mubr.f32.gmra.mrb[0].mxu0 %v730
  %v1215 = vpop.f32.mrb[0].mxu0
  %v1216 = vadd.f32 %v1131, %v1215
  %v1217 = vpop.f32.mrb[0].mxu0
  %1218 = vmatprep.mubr.f32.mxu0 %v970
  %1219 = vmatmul.mubr.f32.gmra.mrb[0].mxu0 %v862
  %v1220 = vpop.f32.mrb[0].mxu0
  %v1221 = vadd.f32 %v1136, %v1220
  %v1222 = vpop.f32.mrb[0].mxu0
  %1223 = vmatprep.mubr.f32.mxu0 %v972
  %1224 = vmatmul.mubr.f32.gmra.mrb[0].mxu0 %v881
  %v1225 = vpop.f32.mrb[0].mxu0
  %v1226 = vadd.f32 %v1141, %v1225
  %v1227 = vpop.f32.mrb[0].mxu0
  %1228 = vdwg.mxu0
  %v1229 = vadd.f32 %v540, %v1211
  %v1230 = vadd.f32 %v545, %v1216
  %v1231 = vadd.f32 %v550, %v1221
  %v1232 = vadd.f32 %v555, %v1226
  %v1233 = vmax.f32 %v1229, 0.0
  %v1234 = vmax.f32 %v1230, 0.0
  %v1235 = vmax.f32 %v1231, 0.0
  %v1236 = vmax.f32 %v1232, 0.0
  %1238 = vrot.lane.b32.xlu0 %v1234, 32
  %v1239 = vpop.permute.xlu0 %1238
  %1242 = vrot.lane.b32.xlu0 %v1235, 64
  %v1243 = vpop.permute.xlu0 %1242
  %1246 = vrot.lane.b32.xlu0 %v1236, 96
  %v1247 = vpop.permute.xlu0 %1246
  %v1249 = vsel %vm185, %v1233, %v1239
  %v1250 = vsel %vm697, %v1249, %v1243
  %v1251 = vsel %vm700, %v1250, %v1247
  %1252 = vst [vmem:[%s3] sm:$0xff] %v1251
  // Predicated region
  $region14: #{inc_block_forward.1} parent=0 // pred_check
    _
  $region15: #{inc_block_forward.1} parent=0 // pred_check_branch
    %1254 = sbr.rel (0) target = $region17
  $region16: #{inc_block_forward.1} parent=0 // pred_region
    _
  $region17: #{inc_block_forward.1} parent=0 // pred_fallthru
    _
  // Predicated region
  $region18: #{inc_block_forward.1} parent=0 // pred_check
    _
  $region19: #{inc_block_forward.1} parent=0 // pred_check_branch
    %1256 = sbr.rel (0) target = $region21
  $region20: #{inc_block_forward.1} parent=0 // pred_region
    _
  $region21: #{inc_block_forward.1} parent=0 // pred_fallthru
    _

</llo_original>
